<compile_context>
chip_gen: v7x
topology: tpu7x:2x2x1
jax: 0.10.0
libtpu: 0.0.40
codegen_flags: <defaults>
</compile_context>

<pallas_src>
import functools

import jax
import jax.numpy as jnp
from jax import lax
from jax.experimental import pallas as pl
from jax.experimental.pallas import tpu as pltpu


def _round_up(n, m):
    return ((n + m - 1) // m) * m


def _layernorm_kernel(x_ref, gamma_ref, beta_ref, o_ref, *, eps, hidden, n_pad_h):
    """Normalize a (tR, Hp) slab over the last (lane) axis.

    Padded lanes (n_pad_h of them) hold zeros in x, so the row sum is already
    correct; the variance sum gets an exact correction for the padded
    xc = -mean entries. All statistics are accumulated in f32; the result is
    cast back to the output dtype on store.
    """
    x = x_ref[...].astype(jnp.float32)

    inv_h = jnp.float32(1.0 / hidden)
    mean = jnp.sum(x, axis=-1, keepdims=True) * inv_h            # (tR, 1)
    xc = x - mean
    ssq = jnp.sum(xc * xc, axis=-1, keepdims=True)               # (tR, 1)
    if n_pad_h:
        # padded lanes contributed n_pad_h * mean^2 to ssq; remove exactly.
        ssq = ssq - jnp.float32(n_pad_h) * (mean * mean)
    var = ssq * inv_h                                            # biased, like torch .mean
    inv = lax.rsqrt(var + jnp.float32(eps))                      # EUP rsqrt

    g = gamma_ref[...].astype(jnp.float32)                       # (1, Hp) broadcasts
    b = beta_ref[...].astype(jnp.float32)

    o_ref[...] = (xc * inv * g + b).astype(o_ref.dtype)


def _pick_row_tile(rows, hidden_p, itemsize, *, target_bytes=2 << 20,
                   vmem_budget=24 << 20, min_grid=4):
    """Choose the row-tile height tR.

    * tR is a multiple of the dtype's sublane packing (8 f32 / 16 bf16 / 32 int8).
    * The input tile targets ~target_bytes (1-4 MiB streaming sweet spot).
    * Total per-step VMEM working set (double-buffered in + out in the input
      dtype plus ~2 f32 intermediates from the in-kernel upcast) stays under
      vmem_budget -> fits v7x's 64 MiB per TC as well as v5e/v6e.
    * When rows allow, keep at least `min_grid` grid steps so both v7x
      TensorCores get work under megacore sharding.
    """
    sub = max(8, 32 // max(1, itemsize))

    per_row_ws = hidden_p * (4 * itemsize + 2 * 4)
    cap_ws = max(sub, (vmem_budget // per_row_ws) // sub * sub)
    cap_tile = max(sub, (target_bytes // (hidden_p * itemsize)) // sub * sub)
    cap = min(cap_ws, cap_tile)

    if rows >= min_grid * sub:
        cap = min(cap, max(sub, (rows // min_grid) // sub * sub))

    # TODO(synk): for extremely large hidden sizes where even a (sub, Hp) slab
    # exceeds the VMEM budget, tile the hidden axis with a two-pass reduction.
    tR = min(cap, _round_up(rows, sub))
    return max(sub, tR)


def layer_norm_pallas(x, gamma, beta, *, variance_epsilon=1e-12):
    """Forward pass of the TF-style LayerNorm as a Pallas TPU kernel.

    x:      (..., H)
    gamma:  (H,)
    beta:   (H,)
    """
    orig_shape = x.shape
    H = orig_shape[-1]
    x2 = x.reshape(-1, H)
    R = x2.shape[0]
    itemsize = jnp.dtype(x.dtype).itemsize

    # Lane-dense hidden axis: pad H up to a multiple of 128.
    Hp = _round_up(H, 128)
    n_pad_h = Hp - H

    # Sublane-aligned row tile; pad R up to a multiple of it (padded rows are
    # all zeros -> var=0, inv=rsqrt(eps) finite, output rows sliced off below).
    tR = _pick_row_tile(R, Hp, itemsize)
    Rp = _round_up(R, tR)
    grid_steps = Rp // tR

    if Rp != R or n_pad_h:
        x2 = jnp.pad(x2, ((0, Rp - R), (0, n_pad_h)))

    gamma2 = gamma.reshape(1, H)
    beta2 = beta.reshape(1, H)
    if n_pad_h:
        gamma2 = jnp.pad(gamma2, ((0, 0), (0, n_pad_h)), constant_values=1)
        beta2 = jnp.pad(beta2, ((0, 0), (0, n_pad_h)))

    kernel = functools.partial(
        _layernorm_kernel,
        eps=float(variance_epsilon),
        hidden=H,
        n_pad_h=n_pad_h,
    )

    # If the chosen tile ends up small (<~1 MiB) and there are enough steps,
    # deepen the input pipeline so the DMA stays ahead of compute.
    x_spec_kwargs = {}
    if tR * Hp * itemsize < (1 << 20) and grid_steps >= 3:
        x_spec_kwargs["pipeline_mode"] = pl.Buffered(3)

    out2 = pl.pallas_call(
        kernel,
        out_shape=jax.ShapeDtypeStruct((Rp, Hp), x.dtype),
        grid_spec=pltpu.PrefetchScalarGridSpec(
            num_scalar_prefetch=0,
            grid=(grid_steps,),
            in_specs=[
                pl.BlockSpec((tR, Hp), lambda i: (i, 0), **x_spec_kwargs),  # x rows
                pl.BlockSpec((1, Hp), lambda i: (0, 0)),    # gamma (VMEM-resident)
                pl.BlockSpec((1, Hp), lambda i: (0, 0)),    # beta  (VMEM-resident)
            ],
            out_specs=pl.BlockSpec((tR, Hp), lambda i: (i, 0)),
        ),
        compiler_params=pltpu.CompilerParams(
            # Row tiles are independent -> megacore sharding on v7x.
            # TODO(synk): if xprof shows only one v7x TC busy, switch this
            # axis to pltpu.CORE_PARALLEL.
            dimension_semantics=("parallel",),
            vmem_limit_bytes=48 << 20,
        ),
    )(x2, gamma2, beta2)

    out2 = out2[:R, :H]
    return out2.reshape(orig_shape)


def _layer_norm_ref(x, gamma, beta, eps):
    x32 = x.astype(jnp.float32)
    u = jnp.mean(x32, axis=-1, keepdims=True)
    s = jnp.mean((x32 - u) ** 2, axis=-1, keepdims=True)
    y = (x32 - u) / jnp.sqrt(s + eps)
    return (gamma.astype(jnp.float32) * y + beta.astype(jnp.float32)).astype(x.dtype)


if __name__ == "__main__":
    key = jax.random.PRNGKey(0)
    k1, k2, k3 = jax.random.split(key, 3)

    B, S, H = 2, 8, 128          # small shapes; hidden kept lane-dense (128)
    eps = 1e-12

    x = jax.random.normal(k1, (B, S, H), dtype=jnp.float32)
    gamma = 1.0 + 0.1 * jax.random.normal(k2, (H,), dtype=jnp.float32)
    beta = 0.1 * jax.random.normal(k3, (H,), dtype=jnp.float32)

    y = layer_norm_pallas(x, gamma, beta, variance_epsilon=eps)
    y = jax.block_until_ready(y)

    y_ref = _layer_norm_ref(x, gamma, beta, eps)

    assert y.shape == x.shape and y.dtype == x.dtype
    max_err = float(jnp.max(jnp.abs(y - y_ref)))
    assert max_err < 1e-5, f"LayerNorm mismatch, max abs err = {max_err}"

    # Sanity: per-row normalized output (before affine) has ~0 mean, ~1 std.
    y_norm = (y - beta) / gamma
    row_mean = jnp.mean(y_norm, axis=-1)
    row_std = jnp.std(y_norm, axis=-1)
    assert float(jnp.max(jnp.abs(row_mean))) < 1e-5
    assert float(jnp.max(jnp.abs(row_std - 1.0))) < 1e-3

    # Exercise the padded paths too: H not a multiple of 128 and R not a
    # multiple of the sublane tile.
    Hq, Rq = 96, 11
    xq = jax.random.normal(k1, (Rq, Hq), dtype=jnp.float32)
    gq = 1.0 + 0.1 * jax.random.normal(k2, (Hq,), dtype=jnp.float32)
    bq = 0.1 * jax.random.normal(k3, (Hq,), dtype=jnp.float32)
    yq = jax.block_until_ready(layer_norm_pallas(xq, gq, bq, variance_epsilon=eps))
    yq_ref = _layer_norm_ref(xq, gq, bq, eps)
    assert float(jnp.max(jnp.abs(yq - yq_ref))) < 1e-5

    print("KERNEL_OK")
</pallas_src>

<mosaic_0001>
module attributes {stable_mosaic.version = 11 : i64} {
  func.func @_layernorm_kernel(%arg0: i32, %arg1: memref<16x128xf32, #tpu.memory_space<vmem>>, %arg2: memref<1x128xf32, #tpu.memory_space<vmem>>, %arg3: memref<1x128xf32, #tpu.memory_space<vmem>>, %arg4: memref<16x128xf32, #tpu.memory_space<vmem>>) attributes {dimension_semantics = [#tpu.dimension_semantics<parallel>], iteration_bounds = array<i64: 1>, scalar_prefetch = 0 : i64, scratch_operands = 0 : i64, tpu.core_type = #tpu.core_type<tc>, window_params = [{transform_indices = @transform_0, window_bounds = array<i64: 16, 128>}, {pipeline_mode = #tpu.pipeline_mode<synchronous>, transform_indices = @transform_1, window_bounds = array<i64: 1, 128>}, {pipeline_mode = #tpu.pipeline_mode<synchronous>, transform_indices = @transform_2, window_bounds = array<i64: 1, 128>}, {transform_indices = @transform_3, window_bounds = array<i64: 16, 128>}]} {
    %c0 = arith.constant 0 : index
    %c0_0 = arith.constant 0 : index
    %0 = vector.load %arg1[%c0, %c0_0] : memref<16x128xf32, #tpu.memory_space<vmem>>, vector<16x128xf32>
    %cst = arith.constant dense<0.000000e+00> : vector<16xf32>
    %1 = vector.multi_reduction <add>, %0, %cst [1] : vector<16x128xf32> to vector<16xf32>
    %2 = vector.shape_cast %1 : vector<16xf32> to vector<16x1xf32>
    %cst_1 = arith.constant 7.812500e-03 : f32
    %3 = vector.broadcast %cst_1 : f32 to vector<16x1xf32>
    %4 = arith.mulf %2, %3 : vector<16x1xf32>
    %5 = vector.broadcast %4 : vector<16x1xf32> to vector<16x128xf32>
    %6 = arith.subf %0, %5 : vector<16x128xf32>
    %7 = arith.mulf %6, %6 : vector<16x128xf32>
    %cst_2 = arith.constant dense<0.000000e+00> : vector<16xf32>
    %8 = vector.multi_reduction <add>, %7, %cst_2 [1] : vector<16x128xf32> to vector<16xf32>
    %9 = vector.shape_cast %8 : vector<16xf32> to vector<16x1xf32>
    %cst_3 = arith.constant 7.812500e-03 : f32
    %10 = vector.broadcast %cst_3 : f32 to vector<16x1xf32>
    %11 = arith.mulf %9, %10 : vector<16x1xf32>
    %cst_4 = arith.constant 9.99999996E-13 : f32
    %12 = vector.broadcast %cst_4 : f32 to vector<16x1xf32>
    %13 = arith.addf %11, %12 : vector<16x1xf32>
    %14 = math.rsqrt %13 : vector<16x1xf32>
    %c0_5 = arith.constant 0 : index
    %c0_6 = arith.constant 0 : index
    %15 = vector.load %arg2[%c0_5, %c0_6] : memref<1x128xf32, #tpu.memory_space<vmem>>, vector<1x128xf32>
    %c0_7 = arith.constant 0 : index
    %c0_8 = arith.constant 0 : index
    %16 = vector.load %arg3[%c0_7, %c0_8] : memref<1x128xf32, #tpu.memory_space<vmem>>, vector<1x128xf32>
    %17 = vector.broadcast %14 : vector<16x1xf32> to vector<16x128xf32>
    %18 = arith.mulf %6, %17 : vector<16x128xf32>
    %19 = vector.broadcast %15 : vector<1x128xf32> to vector<16x128xf32>
    %20 = arith.mulf %18, %19 : vector<16x128xf32>
    %21 = vector.broadcast %16 : vector<1x128xf32> to vector<16x128xf32>
    %22 = arith.addf %20, %21 : vector<16x128xf32>
    %c0_9 = arith.constant 0 : index
    %c0_10 = arith.constant 0 : index
    %23 = vector.load %arg4[%c0_9, %c0_10] : memref<16x128xf32, #tpu.memory_space<vmem>>, vector<16x128xf32>
    tpu.vector_store %arg4[%c0_9, %c0_10], %22 {strides = array<i32>} : memref<16x128xf32, #tpu.memory_space<vmem>>, vector<16x128xf32>,
    return
  }
  func.func @transform_0(%arg0: i32) -> (i32, i32) {
    %c0_i32 = arith.constant 0 : i32
    %c0_i32_0 = arith.constant 0 : i32
    return %arg0, %c0_i32 : i32, i32
  }
  func.func @transform_1(%arg0: i32) -> (i32, i32) {
    %c0_i32 = arith.constant 0 : i32
    %c0_i32_0 = arith.constant 0 : i32
    %c0_i32_1 = arith.constant 0 : i32
    return %c0_i32, %c0_i32_0 : i32, i32
  }
  func.func @transform_2(%arg0: i32) -> (i32, i32) {
    %c0_i32 = arith.constant 0 : i32
    %c0_i32_0 = arith.constant 0 : i32
    %c0_i32_1 = arith.constant 0 : i32
    return %c0_i32, %c0_i32_0 : i32, i32
  }
  func.func @transform_3(%arg0: i32) -> (i32, i32) {
    %c0_i32 = arith.constant 0 : i32
    %c0_i32_0 = arith.constant 0 : i32
    return %arg0, %c0_i32 : i32, i32
  }
}

</mosaic_0001>

<llo_original>
// kernel: tpu_custom_call.1
$region0: #{tpu_custom_call.1}
  #allocation0 [shape = 'u32[]', space=smem, size = 0x4, offset = 0x4, fixed_abs, tag = 'smem constant byte address 0x4 - core index']
  #allocation1 [shape = 'u32[144,128]{1,0:T(1,128)}', space=vmem, size = 0x12000, scoped, tag = 'internal scratch']
  %s0 = inlined_call_operand.hbm [shape: f32[16,128], index: 0, kind: input, shape index: {}]
  %s1 = inlined_call_operand.vmem [shape: f32[1,128], index: 1, kind: input, shape index: {}]
  %s2 = inlined_call_operand.vmem [shape: f32[1,128], index: 2, kind: input, shape index: {}]
  %s3 = inlined_call_operand.hbm [shape: f32[16,128], index: 3, kind: output, shape index: {}]
  %s4 = sld [smem:[#allocation0]]
  $region26: #{tpu_custom_call.1} parent=0
    _
  %s6 = ssub.s32 1, %s4
  %s7 = scalar_select 0, %s6, %s4
  $region1: #{tpu_custom_call.1} parent=0
    #allocation2 [shape = 'u8[8192]{0}', space=vmem, size = 0x2000, scoped, tag = 'input window, operand 0, single buffered']
    #allocation3 [shape = 's32[1]{0}', space=sflag, size = 0x4, scoped, tag = 'scoped memory for tpu_custom_call.1']
    #allocation4 [shape = 's32[1]{0}', space=sflag, size = 0x4, scoped, tag = 'scoped memory for tpu_custom_call.1']
    #allocation5 [shape = 'u8[8192]{0}', space=vmem, size = 0x2000, scoped, tag = 'output window, operand 0, single buffered']
    %8 = vsyncpa [#allocation3], 0
    %9 = vsyncpa [#allocation4], 0
    // Predicated region
    $region2: #{tpu_custom_call.1} parent=1 // pred_check
      _
    $region3: #{tpu_custom_call.1} parent=1 // pred_check_branch
      %11 = sbr.rel (0) target = $region5
    $region4: #{tpu_custom_call.1} parent=1 // pred_region
      %s13 = ssub.s32 256, 256
      %14 = vsyncadd [#allocation3], %s13
      %s15 = sshll.u32 [#allocation2], 4
      %s16 = int_to_ptr.vmem [resolvable:$true] %s15
      %21 = dma.hbm_to_vmem [thread:$0]  %s0, 256, %s16, [#allocation3], 128, 128, 8
    $region5: #{tpu_custom_call.1} parent=1 // pred_fallthru
      _
    // Predicated region
    $region6: #{tpu_custom_call.1} parent=1 // pred_check
      _
    $region7: #{tpu_custom_call.1} parent=1 // pred_check_branch
      %23 = sbr.rel (0) target = $region9
    $region8: #{tpu_custom_call.1} parent=1 // pred_region
      _
    $region9: #{tpu_custom_call.1} parent=1 // pred_fallthru
      _
    // Predicated region
    $region10: #{tpu_custom_call.1} parent=1 // pred_check
      _
    $region11: #{tpu_custom_call.1} parent=1 // pred_check_branch
      %25 = sbr.rel (0) target = $region13
    $region12: #{tpu_custom_call.1} parent=1 // pred_region
      _
    $region13: #{tpu_custom_call.1} parent=1 // pred_fallthru
      _
    // Predicated region
    $region14: #{tpu_custom_call.1} parent=1 // pred_check
      _
    $region15: #{tpu_custom_call.1} parent=1 // pred_check_branch
      %27 = sbr.rel (0) target = $region17
    $region16: #{tpu_custom_call.1} parent=1 // pred_region
      %28 = dma.done [#allocation3], 256
    $region17: #{tpu_custom_call.1} parent=1 // pred_fallthru
      _
    %v29 = vld [vmem:[#allocation2] sm:$0xff]
    %v30 = vld [vmem:[#allocation2 + $0x8] sm:$0xff]
    %31 = vadd.xlane.f32.xlu0 %v29
    %v32 = vpop.xlane.xlu0 %31
    %33 = vadd.xlane.f32.xlu0 %v30
    %v34 = vpop.xlane.xlu0 %33
    %v35 = vmul.f32 %v32, 0.0078125
    %v36 = vmul.f32 %v34, 0.0078125
    %v37 = vsub.f32 %v29, %v35
    %v38 = vsub.f32 %v30, %v36
    %v39 = vmul.f32 %v37, %v37
    %v40 = vmul.f32 %v38, %v38
    %41 = vadd.xlane.f32.xlu0 %v39
    %v42 = vpop.xlane.xlu0 %41
    %43 = vadd.xlane.f32.xlu0 %v40
    %v44 = vpop.xlane.xlu0 %43
    %v45 = vmul.f32 %v42, 0.0078125
    %v46 = vmul.f32 %v44, 0.0078125
    %v47 = vadd.f32 %v45, 1e-12
    %v48 = vadd.f32 %v46, 1e-12
    %v49 = vrsqrt.pop %v47
    %v50 = vrsqrt.pop %v48
    %v51 = vld [vmem:[%s1] sm:$0x1]
    %v52 = vld [vmem:[%s2] sm:$0x1]
    %v53 = vmul.f32 %v37, %v49
    %v54 = vmul.f32 %v38, %v50
    %v56 = vlaneseq
    %v57 = vshrl.u32 %v56, 7
    %v58 = vsub.s32 0, %v57
    %v59 = vrot.slane %v51, %v58
    %v61 = vmul.f32 %v53, %v59
    %v62 = vmul.f32 %v54, %v59
    %v64 = vlaneseq
    %v65 = vshrl.u32 %v64, 7
    %v66 = vsub.s32 0, %v65
    %v67 = vrot.slane %v52, %v66
    %v69 = vadd.f32 %v61, %v67
    %v70 = vadd.f32 %v62, %v67
    %71 = vst [vmem:[#allocation5] sm:$0xff] %v69
    %72 = vst [vmem:[#allocation5 + $0x8] sm:$0xff] %v70
    // Predicated region
    $region18: #{tpu_custom_call.1} parent=1 // pred_check
      _
    $region19: #{tpu_custom_call.1} parent=1 // pred_check_branch
      %74 = sbr.rel (0) target = $region21
    $region20: #{tpu_custom_call.1} parent=1 // pred_region
      %s76 = ssub.s32 256, 256
      %77 = vsyncadd [#allocation4], %s76
      %s78 = sshll.u32 [#allocation5], 4
      %s79 = int_to_ptr.vmem [resolvable:$true] %s78
      %84 = dma.vmem_to_hbm [thread:$0]  %s79, 256, %s3, [#allocation4], 128, 128, 8
    $region21: #{tpu_custom_call.1} parent=1 // pred_fallthru
      _
    // Predicated region
    $region22: #{tpu_custom_call.1} parent=1 // pred_check
      _
    $region23: #{tpu_custom_call.1} parent=1 // pred_check_branch
      %86 = sbr.rel (0) target = $region25
    $region24: #{tpu_custom_call.1} parent=1 // pred_region
      %87 = dma.done [#allocation4], 256
    $region25: #{tpu_custom_call.1} parent=1 // pred_fallthru
      _
    %88 = vsyncpa [#allocation3], 1
    %89 = vsyncpa [#allocation4], 1

</llo_original>
